<compile_context>
chip_gen: v7x
topology: tpu7x:2x2x1
jax: 0.10.0
libtpu: 0.0.40
codegen_flags: <defaults>
</compile_context>

<pallas_src>
import functools

import jax
import jax.numpy as jnp
from jax.experimental import pallas as pl
from jax.experimental.pallas import tpu as pltpu


_LANE = 128
_TILE_CAP = 1024   # max tk / tn
_TM_CAP = 1024     # whole batch in one M tile up to this many rows


def _round_up(v: int, m: int) -> int:
    return ((v + m - 1) // m) * m


def _pick_tile(dim: int, cap: int):
    """Pick a 128-aligned tile: the full (128-rounded) dim if it fits the cap,
    otherwise a near-even split that minimizes padding.  Returns (tile, padded)."""
    full = _round_up(dim, _LANE)
    if full <= cap:
        return full, full
    steps = (full + cap - 1) // cap
    tile = _round_up((full + steps - 1) // steps, _LANE)
    return tile, tile * steps


def _weight_padding(n_in: int, n_cols: int):
    """(tk, K_pad, tn, N_pad) — shared by param construction and the forward."""
    tk, K = _pick_tile(n_in, _TILE_CAP)
    tn, N = _pick_tile(n_cols, _TILE_CAP)
    return tk, K, tn, N


# ----------------------------- Pallas kernels --------------------------------
def _branch_matmul_kernel_acc(x_ref, w_ref, o_ref, acc_ref):
    """One (tm, tn) output tile, accumulated over the K grid axis."""
    k = pl.program_id(2)

    @pl.when(k == 0)
    def _():
        acc_ref[...] = jnp.zeros_like(acc_ref)

    # bf16 x bf16 -> f32 accumulate on the MXU.
    acc_ref[...] += jnp.dot(
        x_ref[...], w_ref[...], preferred_element_type=jnp.float32
    )

    # Cast / write to HBM only once, on the final K step.
    @pl.when(k == pl.num_programs(2) - 1)
    def _():
        o_ref[...] = acc_ref[...].astype(o_ref.dtype)


def _branch_matmul_kernel_single_k(x_ref, w_ref, o_ref):
    """K fits in one tile: no accumulator round-trip through VMEM."""
    o_ref[...] = jnp.dot(
        x_ref[...], w_ref[...], preferred_element_type=jnp.float32
    ).astype(o_ref.dtype)


# ------------------------------- forward --------------------------------------
@functools.partial(jax.jit, static_argnames=("n_b", "n_next_h", "compute_dtype"))
def branch_layer_forward(x, w_kernel, *, n_b, n_next_h,
                         compute_dtype=jnp.bfloat16):
    """x: (batch, n_in) f32; w_kernel: pre-padded (K_pad, N_pad) compute_dtype
    weight built once by make_branch_layer_params. Returns f32
    (batch, n_b, n_next_h)."""
    batch, n_in = x.shape
    n_cols = n_b * n_next_h

    tk, K, tn, N = _weight_padding(n_in, n_cols)
    assert w_kernel.shape == (K, N), (w_kernel.shape, (K, N))
    assert w_kernel.dtype == jnp.dtype(compute_dtype)

    # --- tile selection -------------------------------------------------------
    # Whole batch in one M tile when it fits => weight streams from HBM once.
    tm = min(_round_up(batch, 16), _TM_CAP)      # 16 for bf16 sublane packing
    M = _round_up(batch, tm)

    # Keep at least 2 parallel grid blocks so both v7x TensorCores get work.
    if (M // tm) * (N // tn) < 2:
        if N >= 2 * _LANE and (N // 2) % _LANE == 0:
            tn = N // 2
        elif M >= 32 and (M // 2) % 16 == 0:
            tm = M // 2

    grid_m, grid_n, grid_k = M // tm, N // tn, K // tk

    # --- pad + cast x in the wrapper (tiny; zero padding is matmul-neutral) ---
    x_p = jnp.pad(x.astype(compute_dtype), ((0, M - batch), (0, K - n_in)))

    # --- VMEM budget: 2x-buffered inputs + 2x-buffered output (+ accumulator) -
    in_bytes = jnp.dtype(compute_dtype).itemsize
    need = 2 * (tm * tk + tk * tn) * in_bytes + 2 * tm * tn * 4
    if grid_k > 1:
        need += tm * tn * 4
    vmem_limit = int(min(max(int(1.5 * need), 32 << 20), 48 << 20))

    cost = pl.CostEstimate(
        flops=2 * M * N * K,
        transcendentals=0,
        bytes_accessed=M * K * in_bytes + K * N * in_bytes + M * N * 4,
    )

    if grid_k == 1:
        out = pl.pallas_call(
            _branch_matmul_kernel_single_k,
            out_shape=jax.ShapeDtypeStruct((M, N), jnp.float32),
            grid_spec=pltpu.PrefetchScalarGridSpec(
                num_scalar_prefetch=0,
                grid=(grid_m, grid_n),
                in_specs=[
                    pl.BlockSpec((tm, tk), lambda i, j: (i, 0)),
                    pl.BlockSpec((tk, tn), lambda i, j: (0, j)),
                ],
                out_specs=pl.BlockSpec((tm, tn), lambda i, j: (i, j)),
            ),
            compiler_params=pltpu.CompilerParams(
                dimension_semantics=("parallel", "parallel"),
                vmem_limit_bytes=vmem_limit,
            ),
            cost_estimate=cost,
        )(x_p, w_kernel)
    else:
        out = pl.pallas_call(
            _branch_matmul_kernel_acc,
            out_shape=jax.ShapeDtypeStruct((M, N), jnp.float32),
            grid_spec=pltpu.PrefetchScalarGridSpec(
                num_scalar_prefetch=0,
                grid=(grid_m, grid_n, grid_k),        # reduction axis last
                in_specs=[
                    pl.BlockSpec((tm, tk), lambda i, j, k: (i, k)),
                    pl.BlockSpec((tk, tn), lambda i, j, k: (k, j)),
                ],
                out_specs=pl.BlockSpec((tm, tn), lambda i, j, k: (i, j)),
                scratch_shapes=[pltpu.VMEM((tm, tn), jnp.float32)],
            ),
            compiler_params=pltpu.CompilerParams(
                dimension_semantics=("parallel", "parallel", "arbitrary"),
                vmem_limit_bytes=vmem_limit,
            ),
            cost_estimate=cost,
        )(x_p, w_kernel)

    # Glue: strip padding, then x.view(-1, n_b, n_next_h)
    return out[:batch, :n_cols].reshape(batch, n_b, n_next_h)


# ------------------------- parameter construction ----------------------------
def make_branch_layer_params(key, n_in, n_npb, n_b, n_next_h,
                             compute_dtype=jnp.bfloat16):
    """Deterministic synthetic init mirroring BranchLayer.__init__.

    Returns (all_branch_indices, w, local_weights_f32, w_kernel) where
    w_kernel is the padded compute_dtype weight buffer the kernel consumes —
    built ONCE here so no weight cast/pad happens inside the jitted forward."""
    n_cols = n_b * n_next_h
    k_idx, k_w = jax.random.split(key)

    # create_indices: randint(low=0, high=n_in, size=(n_npb, n_cols))
    all_branch_indices = jax.random.randint(
        k_idx, (n_npb, n_cols), minval=0, maxval=n_in, dtype=jnp.int32
    )

    # create_weights: kaiming_normal_ on (n_npb, n_cols); fan_in = n_cols,
    # gain = sqrt(2)  =>  std = sqrt(2 / n_cols)
    std = jnp.sqrt(2.0 / n_cols)
    w = std * jax.random.normal(k_w, (n_npb, n_cols), dtype=jnp.float32)

    # Forward-pass weight construction (module semantics, done once):
    #   local_weights = mask.clone(); local_weights[indices, arange(cols)] = w
    # The scatter covers exactly the mask's nonzero positions, so the result is
    # w scattered into zeros. Note: for duplicate (row, col) indices the write
    # order is implementation-defined (PyTorch index_put_ is "last write wins").
    cols = jnp.broadcast_to(jnp.arange(n_cols, dtype=jnp.int32), (n_npb, n_cols))
    local_weights = jnp.zeros((n_in, n_cols), dtype=jnp.float32)
    local_weights = local_weights.at[all_branch_indices, cols].set(w)

    # Kernel-ready buffer: one-time cast+pad to the kernel's (K_pad, N_pad)
    # layout so the per-call jitted path never touches the full weight again.
    _, K, _, N = _weight_padding(n_in, n_cols)
    w_kernel = jnp.pad(local_weights.astype(compute_dtype),
                       ((0, K - n_in), (0, N - n_cols)))

    # TODO(synk): when n_npb << n_in, skip the dense formulation entirely and
    # compute against the compact (n_npb, n_cols) weight via scalar-prefetched
    # all_branch_indices + in-kernel gather (PrefetchScalarGridSpec), instead
    # of multiplying by a mostly-zero dense matrix.
    return all_branch_indices, w, local_weights, w_kernel


# pure-JAX reference for sanity checks
def _reference_forward(x, local_weights, n_b, n_next_h):
    y = x @ local_weights
    return y.reshape(-1, n_b, n_next_h)


def _run_case(key, batch, n_in, n_npb, n_b, n_next_h):
    k_params, k_x = jax.random.split(key)
    _, _, local_weights, w_kernel = make_branch_layer_params(
        k_params, n_in, n_npb, n_b, n_next_h
    )
    x = jax.random.normal(k_x, (batch, n_in), dtype=jnp.float32)

    out = branch_layer_forward(x, w_kernel, n_b=n_b, n_next_h=n_next_h)
    out = jax.block_until_ready(out)
    assert out.shape == (batch, n_b, n_next_h), out.shape

    # Tight check vs. a reference using the same bf16-quantized operands
    # (isolates kernel/tiling correctness from quantization).
    x_q = x.astype(jnp.bfloat16).astype(jnp.float32)
    w_q = local_weights.astype(jnp.bfloat16).astype(jnp.float32)
    ref_q = _reference_forward(x_q, w_q, n_b, n_next_h)
    assert jnp.allclose(out, ref_q, atol=2e-3, rtol=2e-3), "mismatch vs bf16 ref"

    # Loose check vs. the full-f32 module semantics (bf16 weight streaming).
    ref_f32 = _reference_forward(x, local_weights, n_b, n_next_h)
    assert jnp.allclose(out, ref_f32, atol=5e-2, rtol=5e-2), "mismatch vs f32 ref"


if __name__ == "__main__":
    key = jax.random.PRNGKey(0)
    k1, k2 = jax.random.split(key)

    # Case 1: small shapes; single-K-tile fast path, parallel grid split on N.
    _run_case(k1, batch=16, n_in=256, n_npb=8, n_b=4, n_next_h=64)

    # Case 2: n_in > tile cap => exercises the K-accumulation path, uneven
    # padding strip (n_cols not a multiple of 128), batch not a tile multiple.
    _run_case(k2, batch=24, n_in=1300, n_npb=8, n_b=2, n_next_h=96)

    print("KERNEL_OK")
</pallas_src>

<mosaic_0001>
module attributes {stable_mosaic.version = 11 : i64} {
  func.func @_branch_matmul_kernel_single_k(%arg0: i32, %arg1: i32, %arg2: memref<16x256xbf16, #tpu.memory_space<vmem>>, %arg3: memref<256x128xbf16, #tpu.memory_space<vmem>>, %arg4: memref<16x128xf32, #tpu.memory_space<vmem>>) attributes {dimension_semantics = [#tpu.dimension_semantics<parallel>, #tpu.dimension_semantics<parallel>], iteration_bounds = array<i64: 1, 2>, scalar_prefetch = 0 : i64, scratch_operands = 0 : i64, tpu.core_type = #tpu.core_type<tc>, window_params = [{transform_indices = @transform_0, window_bounds = array<i64: 16, 256>}, {transform_indices = @transform_1, window_bounds = array<i64: 256, 128>}, {transform_indices = @transform_2, window_bounds = array<i64: 16, 128>}]} {
    %c0 = arith.constant 0 : index
    %c0_0 = arith.constant 0 : index
    %0 = vector.load %arg2[%c0, %c0_0] : memref<16x256xbf16, #tpu.memory_space<vmem>>, vector<16x256xbf16>
    %c0_1 = arith.constant 0 : index
    %c0_2 = arith.constant 0 : index
    %1 = vector.load %arg3[%c0_1, %c0_2] : memref<256x128xbf16, #tpu.memory_space<vmem>>, vector<256x128xbf16>
    %cst = arith.constant dense<0.000000e+00> : vector<16x128xf32>
    %2 = tpu.matmul %0, %1, %cst {dimension_numbers = #tpu.dot_dimension_numbers<[1], [0], [0], [1], [0, 0, 1, 1], [], []>} : vector<16x256xbf16>, vector<256x128xbf16>, vector<16x128xf32> -> vector<16x128xf32>
    %c0_3 = arith.constant 0 : index
    %c0_4 = arith.constant 0 : index
    %3 = vector.load %arg4[%c0_3, %c0_4] : memref<16x128xf32, #tpu.memory_space<vmem>>, vector<16x128xf32>
    tpu.vector_store %arg4[%c0_3, %c0_4], %2 {strides = array<i32>} : memref<16x128xf32, #tpu.memory_space<vmem>>, vector<16x128xf32>,
    return
  }
  func.func @transform_0(%arg0: i32, %arg1: i32) -> (i32, i32) {
    %c0_i32 = arith.constant 0 : i32
    %c0_i32_0 = arith.constant 0 : i32
    return %arg0, %c0_i32 : i32, i32
  }
  func.func @transform_1(%arg0: i32, %arg1: i32) -> (i32, i32) {
    %c0_i32 = arith.constant 0 : i32
    %c0_i32_0 = arith.constant 0 : i32
    return %c0_i32, %arg1 : i32, i32
  }
  func.func @transform_2(%arg0: i32, %arg1: i32) -> (i32, i32) {
    %c0_i32 = arith.constant 0 : i32
    return %arg0, %arg1 : i32, i32
  }
}

</mosaic_0001>

<llo_original>
// kernel: branch_layer_forward.1
$region0: #{branch_layer_forward.1}
  #allocation0 [shape = 'u32[]', space=smem, size = 0x4, offset = 0x4, fixed_abs, tag = 'smem constant byte address 0x4 - core index']
  #allocation1 [shape = 'u32[144,128]{1,0:T(1,128)}', space=vmem, size = 0x12000, scoped, tag = 'internal scratch']
  %s0 = inlined_call_operand.vmem [shape: bf16[16,256], index: 0, kind: input, shape index: {}]
  %s1 = inlined_call_operand.hbm [shape: bf16[256,256], index: 1, kind: input, shape index: {}]
  %s2 = inlined_call_operand.vmem [shape: f32[16,256], index: 2, kind: output, shape index: {}]
  %s3 = sld [smem:[#allocation0]]
  $region79: #{branch_layer_forward.1} parent=0
    _
  %s5 = ssub.s32 1, %s3
  %s6 = scalar_select 0, %s5, %s3
  $region1: #{branch_layer_forward.1} parent=0
    #allocation2 [shape = 'u8[131072]{0}', space=vmem, size = 0x20000, scoped, tag = 'input window, operand 1']
    #allocation3 [shape = 's32[2]{0}', space=sflag, size = 0x8, scoped, tag = 'scoped memory for branch_layer_forward.1']
    #allocation4 [shape = 'u8[16384]{0}', space=vmem, size = 0x4000, scoped, tag = 'output window, operand 0']
    %7 = vsyncpa [#allocation3], 0
    %s8 = scalar_lea.sflag [#allocation3], 1
    %9 = vsyncpa %s8, 0
    loop: start=0, step=1, limit=4
    $region2: #{branch_layer_forward.1} parent=1 // loop_pre_header
      _
    $region3: #{branch_layer_forward.1} parent=1 // loop_header
      %s11 = sphi 0, %s15
      %p12 = scmp.ge.s32.totalorder %s11, 4
      %s18 = sphi 0, %s30
      %s19 = sphi 0, %s26
      %s20 = sphi 0, %s18
      %s21 = sphi 0, %s19
      %s22 = sphi 0, %s20
      %s23 = sphi 0, %s21
      %s33 = sphi 0, %s35
      %s36 = sphi 0, %s33
      %s37 = sphi 0, %s36
      %s53 = sphi 0, %s37
      %s59 = sphi 0, %s61
      %s62 = sphi 0, %s59
      %s63 = sphi 0, %s62
      %s79 = sphi 0, %s63
      %s87 = sphi 0, %s89
      %s90 = sphi 0, %s87
      %s91 = sphi 0, %s90
      %s107 = sphi 0, %s91
    $region4: #{branch_layer_forward.1} parent=1 // loop_header_branch
      %14 = sbr.rel (%p12) target = $region8
    $region5: #{branch_layer_forward.1} parent=1 // loop_body
      %s16 = ssub.s32 %s11, 1
      %s17 = ssub.s32 %s11, 2
      %s24 = sadd.s32 1, %s19
      %p25 = scmp.ge.s32.totalorder %s24, 2
      %s26 = scalar_select %p25, 0, %s24
      %s27 = sadd.s32 1, %s18
      %s28 = scalar_select %p25, %s27, %s18
      %p29 = scmp.ge.s32.totalorder %s28, 1
      %s30 = scalar_select %p29, 0, %s28
      %s31 = ssub.s32 %s18, %s30
      %p32 = scmp.eq.s32.totalorder %s31, 0
      %s34 = sadd.s32 %s33, 1
      %s35 = scalar_select %p32, %s33, %s34
      %p38 = pneg %p32
      %p39 = scmp.eq.s32.totalorder %s11, 1
      %p40 = por %p38, %p39
      %p41 = scmp.ne.s32.totalorder %s33, %s36
      %p42 = scmp.eq.s32.totalorder %s11, 0
      %p43 = por %p41, %p42
      %p44 = scmp.ne.s32.totalorder %s33, %s36
      %p45 = scmp.eq.s32.totalorder %s16, 1
      %p46 = por %p44, %p45
      %p47 = scmp.ne.s32.totalorder %s36, %s37
      %p48 = scmp.eq.s32.totalorder %s16, 0
      %p49 = por %p47, %p48
      %p50 = scmp.ne.s32.totalorder %s36, %s37
      %p51 = scmp.eq.s32.totalorder %s17, 1
      %p52 = por %p50, %p51
      %p54 = scmp.ne.s32.totalorder %s37, %s53
      %p55 = scmp.eq.s32.totalorder %s17, 0
      %p56 = por %p54, %p55
      %s57 = ssub.s32 %s19, %s26
      %p58 = scmp.eq.s32.totalorder %s57, 0
      %s60 = sadd.s32 %s59, 1
      %s61 = scalar_select %p58, %s59, %s60
      %p64 = pneg %p58
      %p65 = scmp.eq.s32.totalorder %s11, 1
      %p66 = por %p64, %p65
      %p67 = scmp.ne.s32.totalorder %s59, %s62
      %p68 = scmp.eq.s32.totalorder %s11, 0
      %p69 = por %p67, %p68
      %p70 = scmp.ne.s32.totalorder %s59, %s62
      %p71 = scmp.eq.s32.totalorder %s16, 1
      %p72 = por %p70, %p71
      %p73 = scmp.ne.s32.totalorder %s62, %s63
      %p74 = scmp.eq.s32.totalorder %s16, 0
      %p75 = por %p73, %p74
      %p76 = scmp.ne.s32.totalorder %s62, %s63
      %p77 = scmp.eq.s32.totalorder %s17, 1
      %p78 = por %p76, %p77
      %p80 = scmp.ne.s32.totalorder %s63, %s79
      %p81 = scmp.eq.s32.totalorder %s17, 0
      %p82 = por %p80, %p81
      %s83 = ssub.s32 %s18, %s30
      %s84 = ssub.s32 %s19, %s26
      %s85 = sor.u32 %s83, %s84
      %p86 = scmp.eq.s32.totalorder %s85, 0
      %s88 = sadd.s32 %s87, 1
      %s89 = scalar_select %p86, %s87, %s88
      %p92 = pneg %p86
      %p93 = scmp.eq.s32.totalorder %s11, 1
      %p94 = por %p92, %p93
      %p95 = scmp.ne.s32.totalorder %s87, %s90
      %p96 = scmp.eq.s32.totalorder %s11, 0
      %p97 = por %p95, %p96
      %p98 = scmp.ne.s32.totalorder %s87, %s90
      %p99 = scmp.eq.s32.totalorder %s16, 1
      %p100 = por %p98, %p99
      %p101 = scmp.ne.s32.totalorder %s90, %s91
      %p102 = scmp.eq.s32.totalorder %s16, 0
      %p103 = por %p101, %p102
      %p104 = scmp.ne.s32.totalorder %s90, %s91
      %p105 = scmp.eq.s32.totalorder %s17, 1
      %p106 = por %p104, %p105
      %p108 = scmp.ne.s32.totalorder %s91, %s107
      %p109 = scmp.eq.s32.totalorder %s17, 0
      %p110 = por %p108, %p109
      %p111 = scmp.le.s32.totalorder 1, %s11
      %p112 = scmp.lt.s32.totalorder %s11, 3
      %p113 = pnand %p111, %p112
      %p114 = pneg %p113
      // Predicated region
      $region9: #{branch_layer_forward.1} parent=5 // pred_check
        _
      $region10: #{branch_layer_forward.1} parent=5 // pred_check_branch
        %116 = sbr.rel (%p113) target = $region12
      $region11: #{branch_layer_forward.1} parent=5 // pred_region
        %s117 = ssub.s32 %s11, 1
        // Predicated region
        $region13: #{branch_layer_forward.1} parent=11 // pred_check
          %p118 = pneg %p49
        $region14: #{branch_layer_forward.1} parent=11 // pred_check_branch
          %120 = sbr.rel (%p118) target = $region16
        $region15: #{branch_layer_forward.1} parent=11 // pred_region
          %s121 = smul.u32 2, %s20
          %p122 = scmp.lt.s32.totalorder %s121, 1
          %s123 = scalar_select %p122, %s121, 1
          %s124 = smul.addr %s123, 2
          %s125 = smul.addr %s124, 4
          %s126 = scalar_lea.vmem %s0, %s125
          %s127 = smul.u32 2, %s20
        $region16: #{branch_layer_forward.1} parent=11 // pred_fallthru
          _
      $region12: #{branch_layer_forward.1} parent=5 // pred_fallthru
        _
      %p128 = scmp.lt.s32.totalorder %s11, 2
      // Predicated region
      $region17: #{branch_layer_forward.1} parent=5 // pred_check
        %p129 = pneg %p128
      $region18: #{branch_layer_forward.1} parent=5 // pred_check_branch
        %131 = sbr.rel (%p129) target = $region20
      $region19: #{branch_layer_forward.1} parent=5 // pred_region
        // Predicated region
        $region21: #{branch_layer_forward.1} parent=19 // pred_check
          %p132 = pneg %p69
        $region22: #{branch_layer_forward.1} parent=19 // pred_check_branch
          %134 = sbr.rel (%p132) target = $region24
        $region23: #{branch_layer_forward.1} parent=19 // pred_region
          %s135 = sand.u32 %s59, 1
          %s136 = scalar_lea.sflag [#allocation3], %s135
          %s137 = sand.u32 %s59, 1
          %s138 = smul.addr %s137, 128
          %s139 = scalar_lea.vmem [#allocation2], %s138
          %s141 = ssub.s32 2048, 2048
          %142 = vsyncadd %s136, %s141
          %s143 = smul.addr %s19, 64
          %s144 = scalar_lea.hbm %s1, %s143
          %s145 = sshll.u32 %s139, 4
          %s146 = int_to_ptr.vmem [resolvable:$true] %s145
          %151 = dma.hbm_to_vmem [thread:$0]  %s144, 2048, %s146, %s136, 128, 64, 4
        $region24: #{branch_layer_forward.1} parent=19 // pred_fallthru
          _
      $region20: #{branch_layer_forward.1} parent=5 // pred_fallthru
        _
      %p152 = scmp.le.s32.totalorder 1, %s11
      %p153 = scmp.lt.s32.totalorder %s11, 3
      %p154 = pnand %p152, %p153
      %p155 = pneg %p154
      // Predicated region
      $region25: #{branch_layer_forward.1} parent=5 // pred_check
        _
      $region26: #{branch_layer_forward.1} parent=5 // pred_check_branch
        %157 = sbr.rel (%p154) target = $region28
      $region27: #{branch_layer_forward.1} parent=5 // pred_region
        %s158 = ssub.s32 %s11, 1
        %s159 = sand.u32 %s62, 1
        %s160 = scalar_lea.sflag [#allocation3], %s159
        %s161 = sand.u32 %s62, 1
        %s162 = smul.addr %s161, 128
        %s163 = scalar_lea.vmem [#allocation2], %s162
        // Predicated region
        $region29: #{branch_layer_forward.1} parent=27 // pred_check
          %p164 = pneg %p75
        $region30: #{branch_layer_forward.1} parent=27 // pred_check_branch
          %166 = sbr.rel (%p164) target = $region32
        $region31: #{branch_layer_forward.1} parent=27 // pred_region
          %167 = dma.done %s160, 2048
        $region32: #{branch_layer_forward.1} parent=27 // pred_fallthru
          _
        %s168 = smul.u32 2, %s20
        %p169 = scmp.lt.s32.totalorder %s168, 1
        %s170 = scalar_select %p169, %s168, 1
        %s171 = smul.addr %s170, 2
        %s172 = smul.addr %s171, 4
        %s173 = scalar_lea.vmem %s0, %s172
        %p174 = pneg %p49
        %p175 = pneg %p46
        %s176 = sand.u32 %s62, 1
        %s177 = scalar_lea.sflag [#allocation3], %s176
        %s178 = sand.u32 %s62, 1
        %s179 = smul.addr %s178, 128
        %s180 = scalar_lea.vmem [#allocation2], %s179
        %p181 = pneg %p75
        %p182 = pneg %p72
        %p183 = pneg %p103
        %p184 = pneg %p100
        %s185 = sand.u32 %s90, 1
        %s186 = sand.u32 %s90, 1
        %s187 = smul.addr %s186, 16
        %s188 = scalar_lea.vmem [#allocation4], %s187
        %s189 = smul.u32 2, %s20
        %p190 = scmp.lt.s32.totalorder %s189, 1
        %s191 = scalar_select %p190, %s189, 1
        %s192 = smul.addr %s191, 2
        %s193 = smul.addr %s192, 4
        %s194 = scalar_lea.vmem %s0, %s193
        %s195 = smul.u32 2, %s20
        %s196 = smul.u32 2, %s20
        %v198 = vld [vmem:[%s194] sm:$0xff]
        %v199 = vld [vmem:[%s194 + $0x8] sm:$0xff]
        %v200 = vld [vmem:[%s163] sm:$0xf]
        %v201 = vld [vmem:[%s163 + $0x4] sm:$0xf]
        %v202 = vld [vmem:[%s163 + $0x8] sm:$0xf]
        %v203 = vld [vmem:[%s163 + $0xc] sm:$0xf]
        %v204 = vld [vmem:[%s163 + $0x10] sm:$0xf]
        %v205 = vld [vmem:[%s163 + $0x14] sm:$0xf]
        %v206 = vld [vmem:[%s163 + $0x18] sm:$0xf]
        %v207 = vld [vmem:[%s163 + $0x1c] sm:$0xf]
        %v208 = vld [vmem:[%s163 + $0x20] sm:$0xf]
        %v209 = vld [vmem:[%s163 + $0x24] sm:$0xf]
        %v210 = vld [vmem:[%s163 + $0x28] sm:$0xf]
        %v211 = vld [vmem:[%s163 + $0x2c] sm:$0xf]
        %v212 = vld [vmem:[%s163 + $0x30] sm:$0xf]
        %v213 = vld [vmem:[%s163 + $0x34] sm:$0xf]
        %v214 = vld [vmem:[%s163 + $0x38] sm:$0xf]
        %v215 = vld [vmem:[%s163 + $0x3c] sm:$0xf]
        %v216 = vld [vmem:[%s163 + $0x40] sm:$0xf]
        %v217 = vld [vmem:[%s163 + $0x44] sm:$0xf]
        %v218 = vld [vmem:[%s163 + $0x48] sm:$0xf]
        %v219 = vld [vmem:[%s163 + $0x4c] sm:$0xf]
        %v220 = vld [vmem:[%s163 + $0x50] sm:$0xf]
        %v221 = vld [vmem:[%s163 + $0x54] sm:$0xf]
        %v222 = vld [vmem:[%s163 + $0x58] sm:$0xf]
        %v223 = vld [vmem:[%s163 + $0x5c] sm:$0xf]
        %v224 = vld [vmem:[%s163 + $0x60] sm:$0xf]
        %v225 = vld [vmem:[%s163 + $0x64] sm:$0xf]
        %v226 = vld [vmem:[%s163 + $0x68] sm:$0xf]
        %v227 = vld [vmem:[%s163 + $0x6c] sm:$0xf]
        %v228 = vld [vmem:[%s163 + $0x70] sm:$0xf]
        %v229 = vld [vmem:[%s163 + $0x74] sm:$0xf]
        %v230 = vld [vmem:[%s163 + $0x78] sm:$0xf]
        %v231 = vld [vmem:[%s163 + $0x7c] sm:$0xf]
        %v234 = vunpack.c.l.b16 %v198
        %v235 = vunpack.c.h.b16 %v198
        %v236 = vunpack.c.l.b16 %v199
        %v237 = vunpack.c.h.b16 %v199
        %v238 = vpack.c.b16 %v236, %v234
        %v239 = vpack.c.b16 %v237, %v235
        %v274 = vunpack.c.l.b16 %v200
        %v275 = vunpack.c.l.b16 %v201
        %v276 = vunpack.c.l.b16 %v202
        %v277 = vunpack.c.l.b16 %v203
        %v278 = vunpack.c.l.b16 %v204
        %v279 = vunpack.c.l.b16 %v205
        %v280 = vunpack.c.l.b16 %v206
        %v281 = vunpack.c.l.b16 %v207
        %v282 = vunpack.c.l.b16 %v208
        %v283 = vunpack.c.l.b16 %v209
        %v284 = vunpack.c.l.b16 %v210
        %v285 = vunpack.c.l.b16 %v211
        %v286 = vunpack.c.l.b16 %v212
        %v287 = vunpack.c.l.b16 %v213
        %v288 = vunpack.c.l.b16 %v214
        %v289 = vunpack.c.l.b16 %v215
        %v290 = vunpack.c.l.b16 %v216
        %v291 = vunpack.c.l.b16 %v217
        %v292 = vunpack.c.l.b16 %v218
        %v293 = vunpack.c.l.b16 %v219
        %v294 = vunpack.c.l.b16 %v220
        %v295 = vunpack.c.l.b16 %v221
        %v296 = vunpack.c.l.b16 %v222
        %v297 = vunpack.c.l.b16 %v223
        %v298 = vunpack.c.l.b16 %v224
        %v299 = vunpack.c.l.b16 %v225
        %v300 = vunpack.c.l.b16 %v226
        %v301 = vunpack.c.l.b16 %v227
        %v302 = vunpack.c.l.b16 %v228
        %v303 = vunpack.c.l.b16 %v229
        %v304 = vunpack.c.l.b16 %v230
        %v305 = vunpack.c.l.b16 %v231
        %v306 = vpack.c.b16 %v275, %v274
        %v307 = vpack.c.b16 %v277, %v276
        %v308 = vpack.c.b16 %v279, %v278
        %v309 = vpack.c.b16 %v281, %v280
        %v310 = vpack.c.b16 %v283, %v282
        %v311 = vpack.c.b16 %v285, %v284
        %v312 = vpack.c.b16 %v287, %v286
        %v313 = vpack.c.b16 %v289, %v288
        %v314 = vpack.c.b16 %v291, %v290
        %v315 = vpack.c.b16 %v293, %v292
        %v316 = vpack.c.b16 %v295, %v294
        %v317 = vpack.c.b16 %v297, %v296
        %v318 = vpack.c.b16 %v299, %v298
        %v319 = vpack.c.b16 %v301, %v300
        %v320 = vpack.c.b16 %v303, %v302
        %v321 = vpack.c.b16 %v305, %v304
        %338 = vmatprep.subr.bf16.mxu0 0
        %339 = vmatpush1.bf16.msra.mxu0 %v306
        %340 = vmatprep.subr.bf16.mxu0 0
        %341 = vmatpush1.bf16.msra.mxu0 %v307
        %342 = vmatprep.subr.bf16.mxu0 0
        %343 = vmatpush1.bf16.msra.mxu0 %v308
        %344 = vmatprep.subr.bf16.mxu0 0
        %345 = vmatpush1.bf16.msra.mxu0 %v309
        %346 = vmatprep.subr.bf16.mxu0 0
        %347 = vmatpush1.bf16.msra.mxu0 %v310
        %348 = vmatprep.subr.bf16.mxu0 0
        %349 = vmatpush1.bf16.msra.mxu0 %v311
        %350 = vmatprep.subr.bf16.mxu0 0
        %351 = vmatpush1.bf16.msra.mxu0 %v312
        %352 = vmatprep.subr.bf16.mxu0 0
        %353 = vmatpush1.bf16.msra.mxu0 %v313
        %354 = vmatprep.subr.bf16.mxu0 0
        %355 = vmatpush1.bf16.msra.mxu0 %v314
        %356 = vmatprep.subr.bf16.mxu0 0
        %357 = vmatpush1.bf16.msra.mxu0 %v315
        %358 = vmatprep.subr.bf16.mxu0 0
        %359 = vmatpush1.bf16.msra.mxu0 %v316
        %360 = vmatprep.subr.bf16.mxu0 0
        %361 = vmatpush1.bf16.msra.mxu0 %v317
        %362 = vmatprep.subr.bf16.mxu0 0
        %363 = vmatpush1.bf16.msra.mxu0 %v318
        %364 = vmatprep.subr.bf16.mxu0 0
        %365 = vmatpush1.bf16.msra.mxu0 %v319
        %366 = vmatprep.subr.bf16.mxu0 0
        %367 = vmatpush1.bf16.msra.mxu0 %v320
        %368 = vmatprep.subr.bf16.mxu0 0
        %369 = vmatpush1.bf16.msra.mxu0 %v321
        %370 = vmatprep.mubr.bf16.mxu0 %v239
        %371 = vmatmul.mubr.bf16.gmra.mrb[0].mxu0 %v238
        %v372 = vpop.f32.mrb[0].mxu0
        %v373 = vadd.f32 0.0, %v372
        %v374 = vpop.f32.mrb[0].mxu0
        %v375 = vpop.f32.mrb[0].mxu0
        %v376 = vadd.f32 0.0, %v375
        %v377 = vpop.f32.mrb[0].mxu0
        %378 = vdwg.mxu0
        %379 = vst [vmem:[%s188] sm:$0xff] %v373
        %380 = vst [vmem:[%s188 + $0x8] sm:$0xff] %v376
        %s381 = sand.u32 %s90, 1
        %s382 = sand.u32 %s90, 1
        %s383 = smul.addr %s382, 16
        %s384 = scalar_lea.vmem [#allocation4], %s383
        // Predicated region
        $region33: #{branch_layer_forward.1} parent=27 // pred_check
          %p385 = pneg %p100
        $region34: #{branch_layer_forward.1} parent=27 // pred_check_branch
          %387 = sbr.rel (%p385) target = $region36
        $region35: #{branch_layer_forward.1} parent=27 // pred_region
          %s388 = smul.u32 2, %s20
          %s389 = smul.addr %s388, 2
          %s390 = sadd.s32 %s21, %s389
          %s391 = smul.addr %s390, 8
          %s392 = scalar_lea.vmem %s2, %s391
          // Predicated region
          $region37: #{branch_layer_forward.1} parent=35 // pred_check
            _
          $region38: #{branch_layer_forward.1} parent=35 // pred_check_branch
            %394 = sbr.rel (0) target = $region40
          $region39: #{branch_layer_forward.1} parent=35 // pred_region
            // Predicated region
            $region41: #{branch_layer_forward.1} parent=39 // pred_check
              _
            $region42: #{branch_layer_forward.1} parent=39 // pred_check_branch
              %396 = sbr.rel (0) target = $region44
            $region43: #{branch_layer_forward.1} parent=39 // pred_region
              // Predicated region
              $region56: #{branch_layer_forward.1} parent=43 // pred_check
                _
              $region57: #{branch_layer_forward.1} parent=43 // pred_check_branch
                %413 = sbr.rel (0) target = $region59
              $region58: #{branch_layer_forward.1} parent=43 // pred_region
                loop: start=0, step=1, limit=1
                $region60: #{branch_layer_forward.1} parent=58 // loop_pre_header
                  _
                $region61: #{branch_layer_forward.1} parent=58 // loop_header
                  %s415 = sphi 0, %s419
                  %p416 = scmp.ge.s32.totalorder %s415, 1
                  %s420 = sphi %s384, %s384
                  %s421 = sphi %s392, %s392
                $region62: #{branch_layer_forward.1} parent=58 // loop_header_branch
                  %418 = sbr.rel (%p416) target = $region66
                $region63: #{branch_layer_forward.1} parent=58 // loop_body
                  %v422 = vld [vmem:[%s420] sm:$0xff]
                  %423 = vst [vmem:[%s421] sm:$0xff] %v422
                  %v424 = vld [vmem:[%s420 + $0x8] sm:$0xff]
                  %425 = vst [vmem:[%s421 + $0x10] sm:$0xff] %v424
                $region64: #{branch_layer_forward.1} parent=58 // loop_footer
                  %s419 = sadd.s32 1, %s415
                $region65: #{branch_layer_forward.1} parent=58 // loop_footer_branch
                  %414 = sbr.rel target = $region61
                $region66: #{branch_layer_forward.1} parent=58 // loop_exit
                  _
              $region59: #{branch_layer_forward.1} parent=43 // pred_fallthru
                _
              // Predicated region
              $region67: #{branch_layer_forward.1} parent=43 // pred_check
                _
              $region68: #{branch_layer_forward.1} parent=43 // pred_check_branch
                %427 = sbr.rel target = $region70
              $region69: #{branch_layer_forward.1} parent=43 // pred_region
                _
              $region70: #{branch_layer_forward.1} parent=43 // pred_fallthru
                _
            $region44: #{branch_layer_forward.1} parent=39 // pred_fallthru
              _
            // Predicated region
            $region45: #{branch_layer_forward.1} parent=39 // pred_check
              _
            $region46: #{branch_layer_forward.1} parent=39 // pred_check_branch
              %398 = sbr.rel target = $region48
            $region47: #{branch_layer_forward.1} parent=39 // pred_region
              loop: start=0, step=1, limit=1
              $region49: #{branch_layer_forward.1} parent=47 // loop_pre_header
                _
              $region50: #{branch_layer_forward.1} parent=47 // loop_header
                %s401 = sphi 0, %s405
                %p402 = scmp.ge.s32.totalorder %s401, 1
                %s406 = sphi %s384, %s384
                %s407 = sphi %s392, %s392
              $region51: #{branch_layer_forward.1} parent=47 // loop_header_branch
                %404 = sbr.rel (%p402) target = $region55
              $region52: #{branch_layer_forward.1} parent=47 // loop_body
                %v408 = vld [vmem:[%s406] sm:$0xff]
                %409 = vst [vmem:[%s407] sm:$0xff] %v408
                %v410 = vld [vmem:[%s406 + $0x8] sm:$0xff]
                %411 = vst [vmem:[%s407 + $0x10] sm:$0xff] %v410
              $region53: #{branch_layer_forward.1} parent=47 // loop_footer
                %s405 = sadd.s32 1, %s401
              $region54: #{branch_layer_forward.1} parent=47 // loop_footer_branch
                %400 = sbr.rel target = $region50
              $region55: #{branch_layer_forward.1} parent=47 // loop_exit
                _
            $region48: #{branch_layer_forward.1} parent=39 // pred_fallthru
              _
          $region40: #{branch_layer_forward.1} parent=35 // pred_fallthru
            _
          %428 = vnop
        $region36: #{branch_layer_forward.1} parent=27 // pred_fallthru
          _
      $region28: #{branch_layer_forward.1} parent=5 // pred_fallthru
        _
      %p429 = scmp.le.s32.totalorder 2, %s11
      // Predicated region
      $region71: #{branch_layer_forward.1} parent=5 // pred_check
        %p430 = pneg %p429
      $region72: #{branch_layer_forward.1} parent=5 // pred_check_branch
        %432 = sbr.rel (%p430) target = $region74
      $region73: #{branch_layer_forward.1} parent=5 // pred_region
        %s433 = ssub.s32 %s11, 2
        // Predicated region
        $region75: #{branch_layer_forward.1} parent=73 // pred_check
          %p434 = pneg %p106
        $region76: #{branch_layer_forward.1} parent=73 // pred_check_branch
          %436 = sbr.rel (%p434) target = $region78
        $region77: #{branch_layer_forward.1} parent=73 // pred_region
          %s437 = sand.u32 %s91, 1
          %s438 = sand.u32 %s91, 1
          %s439 = smul.addr %s438, 16
          %s440 = scalar_lea.vmem [#allocation4], %s439
        $region78: #{branch_layer_forward.1} parent=73 // pred_fallthru
          _
      $region74: #{branch_layer_forward.1} parent=5 // pred_fallthru
        _
    $region6: #{branch_layer_forward.1} parent=1 // loop_footer
      %s15 = sadd.s32 1, %s11
    $region7: #{branch_layer_forward.1} parent=1 // loop_footer_branch
      %10 = sbr.rel target = $region3
    $region8: #{branch_layer_forward.1} parent=1 // loop_exit
      _
    %441 = vsyncpa [#allocation3], 1
    %s442 = scalar_lea.sflag [#allocation3], 1
    %443 = vsyncpa %s442, 1

</llo_original>
